<compile_context>
chip_gen: v7x
topology: tpu7x:2x2x1
jax: 0.10.0
libtpu: 0.0.40
codegen_flags: <defaults>
</compile_context>

<pallas_src>
import jax
import jax.numpy as jnp
from jax.experimental import pallas as pl
from jax.experimental.pallas import tpu as pltpu

LANE = 2048        # canonical slab width (multiple of 128)
MAX_TM = 256       # rows per tile -> 256 * 2048 * 4B = 2 MiB per f32 buffer


def _scalar_mul_kernel(s_ref, a_ref, o_ref):
    # s_ref: (1, 1) scalar in SMEM; a_ref/o_ref: (tm, LANE) VMEM tiles.
    s = s_ref[0, 0]
    o_ref[...] = a_ref[...] * s


def scalar_multiply(A: jax.Array, s: float) -> jax.Array:
    """Elementwise A * s computed in a Pallas TPU kernel.

    Accepts any rank/shape. Internally flattened to a fixed-width 2-D slab so
    tile geometry (and therefore VMEM usage) is independent of the input shape.
    """
    orig_shape = A.shape
    dtype = A.dtype
    total = A.size

    if total == 0:
        # Nothing to do for zero-size tensors.
        return (A * jnp.asarray(s, dtype=dtype)).reshape(orig_shape)

    # Flatten and pad to a multiple of LANE so we can reshape to (M, LANE).
    flat = A.reshape(-1)
    padded = pl.cdiv(total, LANE) * LANE
    if padded != total:
        flat = jnp.pad(flat, (0, padded - total))
    M = padded // LANE
    A2 = flat.reshape(M, LANE)

    # Bounded row-tile; Pallas handles a partial last block automatically.
    tm = min(M, MAX_TM)
    grid = (pl.cdiv(M, tm),)

    s_arr = jnp.full((1, 1), s, dtype=dtype)

    out2 = pl.pallas_call(
        _scalar_mul_kernel,
        out_shape=jax.ShapeDtypeStruct((M, LANE), dtype),
        grid=grid,
        in_specs=[
            pl.BlockSpec(memory_space=pltpu.SMEM),          # scalar s (whole array in SMEM)
            pl.BlockSpec((tm, LANE), lambda i: (i, 0)),     # A tile
        ],
        out_specs=pl.BlockSpec((tm, LANE), lambda i: (i, 0)),
        compiler_params=pltpu.CompilerParams(
            dimension_semantics=("parallel",),
        ),
    )(s_arr, A2)

    # Strip padding and restore original shape.
    return out2.reshape(-1)[:total].reshape(orig_shape)


class ModelNew:
    """JAX/Pallas equivalent of the PyTorch ModelNew module."""

    def __call__(self, A: jax.Array, s: float) -> jax.Array:
        return scalar_multiply(A, s)


if __name__ == "__main__":
    key = jax.random.PRNGKey(0)
    # Small 4-D shape consistent with the forward (generic tensor * scalar).
    A = jax.random.normal(key, (2, 4, 16, 16), dtype=jnp.float32)
    s = 3.14

    model = ModelNew()
    C = model(A, s)
    C = jax.block_until_ready(C)

    expected = A * jnp.float32(s)
    assert C.shape == A.shape and C.dtype == A.dtype
    assert jnp.allclose(C, expected, rtol=1e-6, atol=1e-6)

    # Also exercise a shape that is not LANE-aligned and not 2-D.
    A3 = jax.random.normal(jax.random.PRNGKey(1), (3, 5, 37), dtype=jnp.float32)
    C3 = jax.block_until_ready(model(A3, -0.5))
    assert jnp.allclose(C3, A3 * jnp.float32(-0.5), rtol=1e-6, atol=1e-6)

    print("KERNEL_OK")
</pallas_src>

<mosaic_0001>
module attributes {stable_mosaic.version = 11 : i64} {
  func.func @_scalar_mul_kernel(%arg0: i32, %arg1: memref<1x1xf32, #tpu.memory_space<smem>>, %arg2: memref<1x2048xf32, #tpu.memory_space<vmem>>, %arg3: memref<1x2048xf32, #tpu.memory_space<vmem>>) attributes {dimension_semantics = [#tpu.dimension_semantics<parallel>], iteration_bounds = array<i64: 1>, scalar_prefetch = 0 : i64, scratch_operands = 0 : i64, tpu.core_type = #tpu.core_type<tc>, window_params = [{transform_indices = @transform_0, window_bounds = array<i64: 1, 1>}, {transform_indices = @transform_1, window_bounds = array<i64: 1, 2048>}, {transform_indices = @transform_2, window_bounds = array<i64: 1, 2048>}]} {
    %c0 = arith.constant 0 : index
    %c0_0 = arith.constant 0 : index
    %0 = memref.load %arg1[%c0, %c0_0] : memref<1x1xf32, #tpu.memory_space<smem>>
    %c0_1 = arith.constant 0 : index
    %c0_2 = arith.constant 0 : index
    %1 = vector.load %arg2[%c0_1, %c0_2] : memref<1x2048xf32, #tpu.memory_space<vmem>>, vector<1x2048xf32>
    %2 = vector.broadcast %0 : f32 to vector<1x2048xf32>
    %3 = arith.mulf %1, %2 : vector<1x2048xf32>
    %c0_3 = arith.constant 0 : index
    %c0_4 = arith.constant 0 : index
    %4 = vector.load %arg3[%c0_3, %c0_4] : memref<1x2048xf32, #tpu.memory_space<vmem>>, vector<1x2048xf32>
    tpu.vector_store %arg3[%c0_3, %c0_4], %3 {strides = array<i32>} : memref<1x2048xf32, #tpu.memory_space<vmem>>, vector<1x2048xf32>,
    return
  }
  func.func @transform_0(%arg0: i32) -> (i32, i32) {
    %c0_i32 = arith.constant 0 : i32
    %c0_i32_0 = arith.constant 0 : i32
    %c0_i32_1 = arith.constant 0 : i32
    return %c0_i32, %c0_i32_0 : i32, i32
  }
  func.func @transform_1(%arg0: i32) -> (i32, i32) {
    %c0_i32 = arith.constant 0 : i32
    %c0_i32_0 = arith.constant 0 : i32
    return %arg0, %c0_i32 : i32, i32
  }
  func.func @transform_2(%arg0: i32) -> (i32, i32) {
    %c0_i32 = arith.constant 0 : i32
    %c0_i32_0 = arith.constant 0 : i32
    return %arg0, %c0_i32 : i32, i32
  }
}

</mosaic_0001>

<llo_original>
// kernel: tpu_custom_call.1
$region0: #{tpu_custom_call.1}
  #allocation0 [shape = 'u32[]', space=smem, size = 0x4, offset = 0x4, fixed_abs, tag = 'smem constant byte address 0x4 - core index']
  #allocation1 [shape = 'u32[144,128]{1,0:T(1,128)}', space=vmem, size = 0x12000, scoped, tag = 'internal scratch']
  #allocation2 [shape = 'f32[1,1]{1,0:T(1,128)S(6)}', space=smem, size = 0x200, scoped, tag = 'scoped memory for tpu_custom_call.1']
  %s0 = inlined_call_operand.<no memory space> [shape: f32[1,1], index: 0, kind: input, shape index: {}]
  %s1 = inlined_call_operand.hbm [shape: f32[1,2048], index: 1, kind: input, shape index: {}]
  %s2 = inlined_call_operand.hbm [shape: f32[1,2048], index: 2, kind: output, shape index: {}]
  %s3 = sld [smem:[#allocation0]]
  $region22: #{tpu_custom_call.1} parent=0
    _
  %s5 = ssub.s32 1, %s3
  %s6 = scalar_select 0, %s5, %s3
  %7 = sst [smem:[#allocation2]] %s0
  $region1: #{tpu_custom_call.1} parent=0
    #allocation3 [shape = 'u8[8192]{0}', space=vmem, size = 0x2000, scoped, tag = 'input window, operand 1, single buffered']
    #allocation4 [shape = 's32[1]{0}', space=sflag, size = 0x4, scoped, tag = 'scoped memory for tpu_custom_call.1']
    #allocation5 [shape = 's32[1]{0}', space=sflag, size = 0x4, scoped, tag = 'scoped memory for tpu_custom_call.1']
    #allocation6 [shape = 'u8[8192]{0}', space=vmem, size = 0x2000, scoped, tag = 'output window, operand 0, single buffered']
    %8 = vsyncpa [#allocation4], 0
    %9 = vsyncpa [#allocation5], 0
    // Predicated region
    $region2: #{tpu_custom_call.1} parent=1 // pred_check
      _
    $region3: #{tpu_custom_call.1} parent=1 // pred_check_branch
      %11 = sbr.rel (0) target = $region5
    $region4: #{tpu_custom_call.1} parent=1 // pred_region
      _
    $region5: #{tpu_custom_call.1} parent=1 // pred_fallthru
      _
    // Predicated region
    $region6: #{tpu_custom_call.1} parent=1 // pred_check
      _
    $region7: #{tpu_custom_call.1} parent=1 // pred_check_branch
      %13 = sbr.rel (0) target = $region9
    $region8: #{tpu_custom_call.1} parent=1 // pred_region
      %s15 = ssub.s32 256, 256
      %16 = vsyncadd [#allocation4], %s15
      %s18 = sshll.u32 [#allocation3], 4
      %s19 = int_to_ptr.vmem [resolvable:$true] %s18
      %21 = dma.hbm_to_vmem [thread:$0]  %s1, 256, %s19, [#allocation4]
    $region9: #{tpu_custom_call.1} parent=1 // pred_fallthru
      _
    // Predicated region
    $region10: #{tpu_custom_call.1} parent=1 // pred_check
      _
    $region11: #{tpu_custom_call.1} parent=1 // pred_check_branch
      %23 = sbr.rel (0) target = $region13
    $region12: #{tpu_custom_call.1} parent=1 // pred_region
      %24 = dma.done [#allocation4], 256
    $region13: #{tpu_custom_call.1} parent=1 // pred_fallthru
      _
    %s25 = sld [smem:[#allocation2]]
    %v26 = vld [vmem:[#allocation3] sm:$0xff]
    %v27 = vld [vmem:[#allocation3 + $0x8] sm:$0xff]
    %v28 = vstv %s25
    %v29 = vmul.f32 %v26, %v28
    %v30 = vmul.f32 %v27, %v28
    %31 = vst [vmem:[#allocation6] sm:$0xff] %v29
    %32 = vst [vmem:[#allocation6 + $0x8] sm:$0xff] %v30
    // Predicated region
    $region14: #{tpu_custom_call.1} parent=1 // pred_check
      _
    $region15: #{tpu_custom_call.1} parent=1 // pred_check_branch
      %34 = sbr.rel (0) target = $region17
    $region16: #{tpu_custom_call.1} parent=1 // pred_region
      %s36 = ssub.s32 256, 256
      %37 = vsyncadd [#allocation5], %s36
      %s39 = sshll.u32 [#allocation6], 4
      %s40 = int_to_ptr.vmem [resolvable:$true] %s39
      %42 = dma.vmem_to_hbm [thread:$0]  %s40, 256, %s2, [#allocation5]
    $region17: #{tpu_custom_call.1} parent=1 // pred_fallthru
      _
    // Predicated region
    $region18: #{tpu_custom_call.1} parent=1 // pred_check
      _
    $region19: #{tpu_custom_call.1} parent=1 // pred_check_branch
      %44 = sbr.rel (0) target = $region21
    $region20: #{tpu_custom_call.1} parent=1 // pred_region
      %45 = dma.done [#allocation5], 256
    $region21: #{tpu_custom_call.1} parent=1 // pred_fallthru
      _
    %46 = vsyncpa [#allocation4], 1
    %47 = vsyncpa [#allocation5], 1

</llo_original>
